<compile_context>
chip_gen: v5e
topology: v5e:2x2
jax: 0.10.0
libtpu: 0.0.40
codegen_flags: <defaults>
</compile_context>

<pallas_src>
import functools

import jax
import jax.numpy as jnp
from jax.experimental import pallas as pl
from jax.experimental.pallas import tpu as pltpu
import numpy as np

PAD_TOKEN = 0
N_OUT = 5          # Big-5 personality traits
OUT_HALF = 64      # uncertainty head starts at lane 64
OUT_W = 128        # single lane-dense output slab


def _round_up(x, m):
    return ((x + m - 1) // m) * m


def personality_kernel(mask_ref, pooled_ref, w1_ref, b1_ref, w2_ref, b2_ref,
                       out_ref, *, n_chunks, emb_dim):
    # mask   : [TB, C]     per-chunk "has any non-pad token" flag (0/1)
    # pooled : [TB, C*E]   per-chunk pooler_output, lane-dense flattened
    mask = mask_ref[...].astype(jnp.float32)
    pooled = pooled_ref[...].astype(jnp.float32)

    # --- masked sum over chunks: static unrolled lane-slice multiply-add ----
    emb = pooled[:, 0:emb_dim] * mask[:, 0:1]
    for c in range(1, n_chunks):
        emb = emb + pooled[:, c * emb_dim:(c + 1) * emb_dim] * mask[:, c:c + 1]

    # Exact per-row reciprocal of the chunk count (tb divides, not tb*E).
    # (0 valid chunks -> inf, 0 * inf -> NaN: matches torch's 0/0 semantics.)
    inv = 1.0 / jnp.sum(mask, axis=1, keepdims=True)            # [TB, 1]
    emb = emb * inv                                             # [TB, E]

    # --- fused MLPs: one first-layer matmul + ReLU, one second-layer matmul
    h = jnp.dot(emb, w1_ref[...],
                preferred_element_type=jnp.float32) + b1_ref[...]
    h = jnp.maximum(h, 0.0)                                     # [TB, HP]
    z = jnp.dot(h, w2_ref[...],
                preferred_element_type=jnp.float32) + b2_ref[...]  # [TB, 128]

    # mean in lanes 0:64 (only 0:5 used), std = exp(log_u) in lanes 64:128.
    # One unmasked lane-dense store; exp on dead lanes is free (EUP slot).
    lane = jax.lax.broadcasted_iota(jnp.int32, z.shape, dimension=1)
    out_ref[...] = jnp.where(lane >= OUT_HALF, jnp.exp(z), z).astype(out_ref.dtype)


def _pack_params(params, emb_dim, h_dim):
    """Pack the two MLPs into two padded, lane-dense weight matrices.

    W1P [E, HP]   : [w1m | w1u | 0]          (HP = round_up(2*h_dim, 128))
    W2P [HP, 128] : block-diag, mean head -> lanes 0:5, unc head -> lanes 64:69
    """
    h2 = 2 * h_dim
    hp = _round_up(max(h2, 1), 128)
    f32 = jnp.float32

    w1p = jnp.zeros((emb_dim, hp), f32)
    w1p = w1p.at[:, :h_dim].set(params["w1m"].astype(f32))
    w1p = w1p.at[:, h_dim:h2].set(params["w1u"].astype(f32))
    b1p = jnp.zeros((1, hp), f32)
    b1p = b1p.at[:, :h_dim].set(params["b1m"].reshape(1, -1).astype(f32))
    b1p = b1p.at[:, h_dim:h2].set(params["b1u"].reshape(1, -1).astype(f32))

    w2p = jnp.zeros((hp, OUT_W), f32)
    w2p = w2p.at[:h_dim, :N_OUT].set(params["w2m"].astype(f32))
    w2p = w2p.at[h_dim:h2, OUT_HALF:OUT_HALF + N_OUT].set(params["w2u"].astype(f32))
    b2p = jnp.zeros((1, OUT_W), f32)
    b2p = b2p.at[:, :N_OUT].set(params["b2m"].reshape(1, -1).astype(f32))
    b2p = b2p.at[:, OUT_HALF:OUT_HALF + N_OUT].set(params["b2u"].reshape(1, -1).astype(f32))
    return w1p, b1p, w2p, b2p


def personality_classifier(tokens, pooled, params, *, tb=None):
    """Returns (mean, std) of the predicted Normal distribution, shapes [B, 5]."""
    B, C, L = tokens.shape
    E = pooled.shape[-1]
    H = params["w1m"].shape[1]

    # Pad mask computed OUTSIDE the kernel: the [B, C, L] token tensor never
    # reaches the kernel.
    mask = jnp.any(tokens != PAD_TOKEN, axis=-1).astype(jnp.float32)   # [B, C]

    # Lane-dense pooled slab: [B, C*E] (C*E is a multiple of 128 for real BERT).
    pooled2d = pooled.reshape(B, C * E).astype(jnp.float32)

    # Pack / pad the MLP weights once (host-side, tiny).
    w1p, b1p, w2p, b2p = _pack_params(params, E, H)
    HP = w1p.shape[1]

    # Batch tiling: sublane-aligned; big tiles for large B (HBM-bound kernel),
    # and >= 2 grid steps when possible so v7x megacore sharding has work.
    if tb is None:
        if B >= 1024:
            tb = 512
        elif B >= 16:
            tb = _round_up(pl.cdiv(B, 2), 8)
        else:
            tb = _round_up(B, 8)
    grid = (pl.cdiv(B, tb),)   # ragged last block handled by Pallas, no concat

    # VMEM budget: double-buffered streaming tiles + weight copies + headroom.
    tile_bytes = (tb * C * E + tb * C + tb * OUT_W) * 4
    weight_bytes = (E * HP + HP + HP * OUT_W + OUT_W) * 4
    vmem_limit = int(min(max(2 * tile_bytes + 2 * weight_bytes + (4 << 20),
                             16 << 20), 64 << 20))

    kernel = functools.partial(personality_kernel, n_chunks=C, emb_dim=E)

    out = pl.pallas_call(
        kernel,
        out_shape=jax.ShapeDtypeStruct((B, OUT_W), jnp.float32),
        grid=grid,
        in_specs=[
            pl.BlockSpec((tb, C), lambda i: (i, 0)),          # mask tile
            pl.BlockSpec((tb, C * E), lambda i: (i, 0)),      # pooled tile (2-D, lane-dense)
            pl.BlockSpec(w1p.shape, lambda i: (0, 0)),        # weights stay
            pl.BlockSpec(b1p.shape, lambda i: (0, 0)),        # VMEM-resident
            pl.BlockSpec(w2p.shape, lambda i: (0, 0)),
            pl.BlockSpec(b2p.shape, lambda i: (0, 0)),
        ],
        out_specs=pl.BlockSpec((tb, OUT_W), lambda i: (i, 0)),
        compiler_params=pltpu.CompilerParams(
            dimension_semantics=("parallel",),
            vmem_limit_bytes=vmem_limit),
    )(mask, pooled2d, w1p, b1p, w2p, b2p)

    mean = out[:B, :N_OUT]
    std = out[:B, OUT_HALF:OUT_HALF + N_OUT]   # exp already applied in-kernel
    return mean, std


def _linear_init(key, fan_in, fan_out):
    # PyTorch nn.Linear default: U(-1/sqrt(fan_in), 1/sqrt(fan_in))
    kw, kb = jax.random.split(key)
    bound = 1.0 / np.sqrt(fan_in)
    w = jax.random.uniform(kw, (fan_in, fan_out), jnp.float32, -bound, bound)
    b = jax.random.uniform(kb, (1, fan_out), jnp.float32, -bound, bound)
    return w, b


def reference(tokens, pooled, params):
    notpad = (tokens != PAD_TOKEN).astype(jnp.float32)               # [B,C,L]
    mask = (notpad.sum(axis=2) > 0).astype(jnp.float32)              # [B,C]
    emb = (pooled * mask[:, :, None]).sum(axis=1) / mask.sum(axis=1, keepdims=True)
    hm = jnp.maximum(emb @ params["w1m"] + params["b1m"], 0.0)
    mean = hm @ params["w2m"] + params["b2m"]
    hu = jnp.maximum(emb @ params["w1u"] + params["b1u"], 0.0)
    std = jnp.exp(hu @ params["w2u"] + params["b2u"])
    return mean, std


if __name__ == "__main__":
    B, C, L = 2, 3, 8       # batch, chunks per item, tokens per chunk
    E, H = 32, 32           # emb_dim, h_dim

    key = jax.random.PRNGKey(0)
    k_tok, k_pool, k1, k2, k3, k4 = jax.random.split(key, 6)

    # tokens: random ids, last chunk of every item fully padded to exercise the mask.
    tokens = jax.random.randint(k_tok, (B, C, L), 1, 100, dtype=jnp.int32)
    tokens = tokens.at[:, -1, :].set(PAD_TOKEN)

    # Synthetic stand-in for pretrained_model(...).pooler_output per chunk.
    pooled = jax.random.normal(k_pool, (B, C, E), jnp.float32)

    w1m, b1m = _linear_init(k1, E, H)
    w2m, b2m = _linear_init(k2, H, N_OUT)
    w1u, b1u = _linear_init(k3, E, H)
    w2u, b2u = _linear_init(k4, H, N_OUT)
    params = dict(w1m=w1m, b1m=b1m, w2m=w2m, b2m=b2m,
                  w1u=w1u, b1u=b1u, w2u=w2u, b2u=b2u)

    mean, std = personality_classifier(tokens, pooled, params)
    mean, std = jax.block_until_ready((mean, std))

    mean_ref, std_ref = reference(tokens, pooled, params)
    assert np.allclose(np.asarray(mean), np.asarray(mean_ref), atol=1e-4, rtol=1e-4)
    assert np.allclose(np.asarray(std), np.asarray(std_ref), atol=1e-4, rtol=1e-4)

    print("KERNEL_OK")
</pallas_src>

<mosaic_0001>
module attributes {stable_mosaic.version = 11 : i64} {
  func.func @personality_kernel(%arg0: i32, %arg1: memref<8x3xf32, #tpu.memory_space<vmem>>, %arg2: memref<8x96xf32, #tpu.memory_space<vmem>>, %arg3: memref<32x128xf32, #tpu.memory_space<vmem>>, %arg4: memref<1x128xf32, #tpu.memory_space<vmem>>, %arg5: memref<128x128xf32, #tpu.memory_space<vmem>>, %arg6: memref<1x128xf32, #tpu.memory_space<vmem>>, %arg7: memref<8x128xf32, #tpu.memory_space<vmem>>) attributes {dimension_semantics = [#tpu.dimension_semantics<parallel>], iteration_bounds = array<i64: 1>, scalar_prefetch = 0 : i64, scratch_operands = 0 : i64, tpu.core_type = #tpu.core_type<tc>, window_params = [{transform_indices = @transform_0, window_bounds = array<i64: 8, 3>}, {transform_indices = @transform_1, window_bounds = array<i64: 8, 96>}, {pipeline_mode = #tpu.pipeline_mode<synchronous>, transform_indices = @transform_2, window_bounds = array<i64: 32, 128>}, {pipeline_mode = #tpu.pipeline_mode<synchronous>, transform_indices = @transform_3, window_bounds = array<i64: 1, 128>}, {pipeline_mode = #tpu.pipeline_mode<synchronous>, transform_indices = @transform_4, window_bounds = array<i64: 128, 128>}, {pipeline_mode = #tpu.pipeline_mode<synchronous>, transform_indices = @transform_5, window_bounds = array<i64: 1, 128>}, {transform_indices = @transform_6, window_bounds = array<i64: 8, 128>}]} {
    %c0 = arith.constant 0 : index
    %c0_0 = arith.constant 0 : index
    %0 = vector.load %arg1[%c0, %c0_0] : memref<8x3xf32, #tpu.memory_space<vmem>>, vector<8x3xf32>
    %c0_1 = arith.constant 0 : index
    %c0_2 = arith.constant 0 : index
    %1 = vector.load %arg2[%c0_1, %c0_2] : memref<8x96xf32, #tpu.memory_space<vmem>>, vector<8x96xf32>
    %2 = vector.extract_strided_slice %1 {offsets = [0, 0], sizes = [8, 32], strides = [1, 1]} : vector<8x96xf32> to vector<8x32xf32>
    %3 = vector.extract_strided_slice %0 {offsets = [0, 0], sizes = [8, 1], strides = [1, 1]} : vector<8x3xf32> to vector<8x1xf32>
    %4 = vector.broadcast %3 : vector<8x1xf32> to vector<8x32xf32>
    %5 = arith.mulf %2, %4 : vector<8x32xf32>
    %6 = vector.extract_strided_slice %1 {offsets = [0, 32], sizes = [8, 32], strides = [1, 1]} : vector<8x96xf32> to vector<8x32xf32>
    %7 = vector.extract_strided_slice %0 {offsets = [0, 1], sizes = [8, 1], strides = [1, 1]} : vector<8x3xf32> to vector<8x1xf32>
    %8 = vector.broadcast %7 : vector<8x1xf32> to vector<8x32xf32>
    %9 = arith.mulf %6, %8 : vector<8x32xf32>
    %10 = arith.addf %5, %9 : vector<8x32xf32>
    %11 = vector.extract_strided_slice %1 {offsets = [0, 64], sizes = [8, 32], strides = [1, 1]} : vector<8x96xf32> to vector<8x32xf32>
    %12 = vector.extract_strided_slice %0 {offsets = [0, 2], sizes = [8, 1], strides = [1, 1]} : vector<8x3xf32> to vector<8x1xf32>
    %13 = vector.broadcast %12 : vector<8x1xf32> to vector<8x32xf32>
    %14 = arith.mulf %11, %13 : vector<8x32xf32>
    %15 = arith.addf %10, %14 : vector<8x32xf32>
    %cst = arith.constant dense<0.000000e+00> : vector<8xf32>
    %16 = vector.multi_reduction <add>, %0, %cst [1] : vector<8x3xf32> to vector<8xf32>
    %17 = vector.shape_cast %16 : vector<8xf32> to vector<8x1xf32>
    %cst_3 = arith.constant 1.000000e+00 : f32
    %18 = vector.broadcast %cst_3 : f32 to vector<8x1xf32>
    %19 = arith.divf %18, %17 : vector<8x1xf32>
    %20 = vector.broadcast %19 : vector<8x1xf32> to vector<8x32xf32>
    %21 = arith.mulf %15, %20 : vector<8x32xf32>
    %c0_4 = arith.constant 0 : index
    %c0_5 = arith.constant 0 : index
    %22 = vector.load %arg3[%c0_4, %c0_5] : memref<32x128xf32, #tpu.memory_space<vmem>>, vector<32x128xf32>
    %cst_6 = arith.constant dense<0.000000e+00> : vector<8x128xf32>
    %23 = tpu.matmul %21, %22, %cst_6 {dimension_numbers = #tpu.dot_dimension_numbers<[1], [0], [0], [1], [0, 0, 1, 1], [], []>} : vector<8x32xf32>, vector<32x128xf32>, vector<8x128xf32> -> vector<8x128xf32>
    %c0_7 = arith.constant 0 : index
    %c0_8 = arith.constant 0 : index
    %24 = vector.load %arg4[%c0_7, %c0_8] : memref<1x128xf32, #tpu.memory_space<vmem>>, vector<1x128xf32>
    %25 = vector.broadcast %24 : vector<1x128xf32> to vector<8x128xf32>
    %26 = arith.addf %23, %25 : vector<8x128xf32>
    %cst_9 = arith.constant 0.000000e+00 : f32
    %27 = vector.broadcast %cst_9 : f32 to vector<8x128xf32>
    %28 = arith.maximumf %26, %27 : vector<8x128xf32>
    %c0_10 = arith.constant 0 : index
    %c0_11 = arith.constant 0 : index
    %29 = vector.load %arg5[%c0_10, %c0_11] : memref<128x128xf32, #tpu.memory_space<vmem>>, vector<128x128xf32>
    %cst_12 = arith.constant dense<0.000000e+00> : vector<8x128xf32>
    %30 = tpu.matmul %28, %29, %cst_12 {dimension_numbers = #tpu.dot_dimension_numbers<[1], [0], [0], [1], [0, 0, 1, 1], [], []>} : vector<8x128xf32>, vector<128x128xf32>, vector<8x128xf32> -> vector<8x128xf32>
    %c0_13 = arith.constant 0 : index
    %c0_14 = arith.constant 0 : index
    %31 = vector.load %arg6[%c0_13, %c0_14] : memref<1x128xf32, #tpu.memory_space<vmem>>, vector<1x128xf32>
    %32 = vector.broadcast %31 : vector<1x128xf32> to vector<8x128xf32>
    %33 = arith.addf %30, %32 : vector<8x128xf32>
    %34 = tpu.iota {dimensions = array<i32: 1>} : vector<8x128xi32>
    %c64_i32 = arith.constant 64 : i32
    %35 = vector.broadcast %c64_i32 : i32 to vector<8x128xi32>
    %36 = arith.cmpi sge, %34, %35 : vector<8x128xi32>
    %37 = math.exp %33 : vector<8x128xf32>
    %38 = arith.select %36, %37, %33 : vector<8x128xi1>, vector<8x128xf32>
    %c0_15 = arith.constant 0 : index
    %c0_16 = arith.constant 0 : index
    %39 = vector.load %arg7[%c0_15, %c0_16] : memref<8x128xf32, #tpu.memory_space<vmem>>, vector<8x128xf32>
    tpu.vector_store %arg7[%c0_15, %c0_16], %38 {strides = array<i32>} : memref<8x128xf32, #tpu.memory_space<vmem>>, vector<8x128xf32>,
    return
  }
  func.func @transform_0(%arg0: i32) -> (i32, i32) {
    %c0_i32 = arith.constant 0 : i32
    %c0_i32_0 = arith.constant 0 : i32
    return %arg0, %c0_i32 : i32, i32
  }
  func.func @transform_1(%arg0: i32) -> (i32, i32) {
    %c0_i32 = arith.constant 0 : i32
    %c0_i32_0 = arith.constant 0 : i32
    return %arg0, %c0_i32 : i32, i32
  }
  func.func @transform_2(%arg0: i32) -> (i32, i32) {
    %c0_i32 = arith.constant 0 : i32
    %c0_i32_0 = arith.constant 0 : i32
    %c0_i32_1 = arith.constant 0 : i32
    return %c0_i32, %c0_i32_0 : i32, i32
  }
  func.func @transform_3(%arg0: i32) -> (i32, i32) {
    %c0_i32 = arith.constant 0 : i32
    %c0_i32_0 = arith.constant 0 : i32
    %c0_i32_1 = arith.constant 0 : i32
    return %c0_i32, %c0_i32_0 : i32, i32
  }
  func.func @transform_4(%arg0: i32) -> (i32, i32) {
    %c0_i32 = arith.constant 0 : i32
    %c0_i32_0 = arith.constant 0 : i32
    %c0_i32_1 = arith.constant 0 : i32
    return %c0_i32, %c0_i32_0 : i32, i32
  }
  func.func @transform_5(%arg0: i32) -> (i32, i32) {
    %c0_i32 = arith.constant 0 : i32
    %c0_i32_0 = arith.constant 0 : i32
    %c0_i32_1 = arith.constant 0 : i32
    return %c0_i32, %c0_i32_0 : i32, i32
  }
  func.func @transform_6(%arg0: i32) -> (i32, i32) {
    %c0_i32 = arith.constant 0 : i32
    %c0_i32_0 = arith.constant 0 : i32
    return %arg0, %c0_i32 : i32, i32
  }
}

</mosaic_0001>

<llo_original>
// kernel: tpu_custom_call.1
$region0: #{tpu_custom_call.1}
  #allocation0 [shape = 'u32[]', space=smem, size = 0x4, offset = 0x4, fixed_abs, tag = 'smem constant byte address 0x4 - core index']
  #allocation1 [shape = 'u32[72,128]{1,0:T(1,128)}', space=vmem, size = 0x9000, scoped, tag = 'internal scratch']
  %s0 = inlined_call_operand.hbm [shape: f32[2,3], index: 0, kind: input, shape index: {}]
  %s1 = inlined_call_operand.hbm [shape: f32[2,96], index: 1, kind: input, shape index: {}]
  %s2 = inlined_call_operand.hbm [shape: f32[32,128], index: 2, kind: input, shape index: {}]
  %s3 = inlined_call_operand.vmem [shape: f32[1,128], index: 3, kind: input, shape index: {}]
  %s4 = inlined_call_operand.hbm [shape: f32[128,128], index: 4, kind: input, shape index: {}]
  %s5 = inlined_call_operand.vmem [shape: f32[1,128], index: 5, kind: input, shape index: {}]
  %s6 = inlined_call_operand.hbm [shape: f32[2,128], index: 6, kind: output, shape index: {}]
  %s7 = sld [smem:[#allocation0]]
  $region50: #{tpu_custom_call.1} parent=0
    _
  %s9 = ssub.s32 1, %s7
  %s10 = scalar_select 0, %s9, %s7
  $region1: #{tpu_custom_call.1} parent=0
    #allocation2 [shape = 'u8[4096]{0}', space=vmem, size = 0x1000, scoped, tag = 'input window, operand 0, single buffered']
    #allocation3 [shape = 's32[1]{0}', space=sflag, size = 0x4, scoped, tag = 'scoped memory for tpu_custom_call.1']
    #allocation4 [shape = 's32[1]{0}', space=sflag, size = 0x4, scoped, tag = 'scoped memory for tpu_custom_call.1']
    #allocation5 [shape = 'u8[4096]{0}', space=vmem, size = 0x1000, scoped, tag = 'input window, operand 1, single buffered']
    #allocation6 [shape = 's32[1]{0}', space=sflag, size = 0x4, scoped, tag = 'scoped memory for tpu_custom_call.1']
    #allocation7 [shape = 'u8[16384]{0}', space=vmem, size = 0x4000, scoped, tag = 'input window, operand 2, single buffered']
    #allocation8 [shape = 'u8[65536]{0}', space=vmem, size = 0x10000, scoped, tag = 'input window, operand 4, single buffered']
    #allocation9 [shape = 's32[1]{0}', space=sflag, size = 0x4, scoped, tag = 'scoped memory for tpu_custom_call.1']
    #allocation10 [shape = 'u8[4096]{0}', space=vmem, size = 0x1000, scoped, tag = 'output window, operand 0, single buffered']
    %11 = vsyncpa [#allocation3], 0
    %12 = vsyncpa [#allocation6], 0
    %13 = vsyncpa [#allocation9], 0
    %14 = vsyncpa [#allocation4], 0
    // Predicated region
    $region2: #{tpu_custom_call.1} parent=1 // pred_check
      _
    $region3: #{tpu_custom_call.1} parent=1 // pred_check_branch
      %16 = sbr.rel (0) target = $region5
    $region4: #{tpu_custom_call.1} parent=1 // pred_region
      %18 = vsyncadd [#allocation3], 96
      %s19 = sshll.u32 %s0, 4
      %s20 = int_to_ptr.hbm [resolvable:$true] %s19
      %s21 = sshll.u32 [#allocation2], 4
      %s22 = int_to_ptr.vmem [resolvable:$true] %s21
      %27 = dma.hbm_to_vmem [thread:$0]  %s20, 32, %s22, [#allocation3], 32, 32, 2
    $region5: #{tpu_custom_call.1} parent=1 // pred_fallthru
      _
    // Predicated region
    $region6: #{tpu_custom_call.1} parent=1 // pred_check
      _
    $region7: #{tpu_custom_call.1} parent=1 // pred_check_branch
      %29 = sbr.rel (0) target = $region9
    $region8: #{tpu_custom_call.1} parent=1 // pred_region
      %31 = vsyncadd [#allocation6], 96
      %s32 = sshll.u32 %s1, 4
      %s33 = int_to_ptr.hbm [resolvable:$true] %s32
      %s34 = sshll.u32 [#allocation5], 4
      %s35 = int_to_ptr.vmem [resolvable:$true] %s34
      %40 = dma.hbm_to_vmem [thread:$0]  %s33, 32, %s35, [#allocation6], 32, 32, 2
    $region9: #{tpu_custom_call.1} parent=1 // pred_fallthru
      _
    // Predicated region
    $region10: #{tpu_custom_call.1} parent=1 // pred_check
      _
    $region11: #{tpu_custom_call.1} parent=1 // pred_check_branch
      %42 = sbr.rel (0) target = $region13
    $region12: #{tpu_custom_call.1} parent=1 // pred_region
      %44 = vsyncadd [#allocation6], 0
      %s45 = sshll.u32 %s2, 4
      %s46 = int_to_ptr.hbm [resolvable:$true] %s45
      %s47 = sshll.u32 [#allocation7], 4
      %s48 = int_to_ptr.vmem [resolvable:$true] %s47
      %53 = dma.hbm_to_vmem [thread:$0]  %s46, 512, %s48, [#allocation6], 128, 128, 8
    $region13: #{tpu_custom_call.1} parent=1 // pred_fallthru
      _
    // Predicated region
    $region14: #{tpu_custom_call.1} parent=1 // pred_check
      _
    $region15: #{tpu_custom_call.1} parent=1 // pred_check_branch
      %55 = sbr.rel (0) target = $region17
    $region16: #{tpu_custom_call.1} parent=1 // pred_region
      _
    $region17: #{tpu_custom_call.1} parent=1 // pred_fallthru
      _
    // Predicated region
    $region18: #{tpu_custom_call.1} parent=1 // pred_check
      _
    $region19: #{tpu_custom_call.1} parent=1 // pred_check_branch
      %57 = sbr.rel (0) target = $region21
    $region20: #{tpu_custom_call.1} parent=1 // pred_region
      %59 = vsyncadd [#allocation9], 0
      %s60 = sshll.u32 %s4, 4
      %s61 = int_to_ptr.hbm [resolvable:$true] %s60
      %s62 = sshll.u32 [#allocation8], 4
      %s63 = int_to_ptr.vmem [resolvable:$true] %s62
      %68 = dma.hbm_to_vmem [thread:$0]  %s61, 2048, %s63, [#allocation9], 128, 128, 8
    $region21: #{tpu_custom_call.1} parent=1 // pred_fallthru
      _
    // Predicated region
    $region22: #{tpu_custom_call.1} parent=1 // pred_check
      _
    $region23: #{tpu_custom_call.1} parent=1 // pred_check_branch
      %70 = sbr.rel (0) target = $region25
    $region24: #{tpu_custom_call.1} parent=1 // pred_region
      _
    $region25: #{tpu_custom_call.1} parent=1 // pred_fallthru
      _
    // Predicated region
    $region26: #{tpu_custom_call.1} parent=1 // pred_check
      _
    $region27: #{tpu_custom_call.1} parent=1 // pred_check_branch
      %72 = sbr.rel (0) target = $region29
    $region28: #{tpu_custom_call.1} parent=1 // pred_region
      %74 = dma.done [#allocation3], 128
    $region29: #{tpu_custom_call.1} parent=1 // pred_fallthru
      _
    // Predicated region
    $region30: #{tpu_custom_call.1} parent=1 // pred_check
      _
    $region31: #{tpu_custom_call.1} parent=1 // pred_check_branch
      %76 = sbr.rel (0) target = $region33
    $region32: #{tpu_custom_call.1} parent=1 // pred_region
      %78 = dma.done [#allocation6], 128
    $region33: #{tpu_custom_call.1} parent=1 // pred_fallthru
      _
    // Predicated region
    $region34: #{tpu_custom_call.1} parent=1 // pred_check
      _
    $region35: #{tpu_custom_call.1} parent=1 // pred_check_branch
      %80 = sbr.rel (0) target = $region37
    $region36: #{tpu_custom_call.1} parent=1 // pred_region
      %82 = dma.done [#allocation6], 512
    $region37: #{tpu_custom_call.1} parent=1 // pred_fallthru
      _
    // Predicated region
    $region38: #{tpu_custom_call.1} parent=1 // pred_check
      _
    $region39: #{tpu_custom_call.1} parent=1 // pred_check_branch
      %84 = sbr.rel (0) target = $region41
    $region40: #{tpu_custom_call.1} parent=1 // pred_region
      %86 = dma.done [#allocation9], 2048
    $region41: #{tpu_custom_call.1} parent=1 // pred_fallthru
      _
    %v87 = vld [vmem:[#allocation2] sm:$0xff]
    %v88 = vld [vmem:[#allocation5] sm:$0xff]
    %90 = vset.pattern.permute.xlu0 0
    %91 = vperm.xlu0 %90, %v87
    %v92 = vpop.permute.xlu0 %91
    %v94 = vmul.f32 %v88, %v92
    %95 = vset.pattern.permute.xlu0 1
    %96 = vperm.xlu0 %95, %v87
    %v97 = vpop.permute.xlu0 %96
    %v99 = vmul.f32 %v88, %v97
    %101 = vrot.lane.b32.xlu0 %v99, 96
    %v102 = vpop.permute.xlu0 %101
    %v104 = vadd.f32 %v94, %v102
    %105 = vset.pattern.permute.xlu0 2
    %106 = vperm.xlu0 %105, %v87
    %v107 = vpop.permute.xlu0 %106
    %v109 = vmul.f32 %v88, %v107
    %111 = vrot.lane.b32.xlu0 %v109, 64
    %v112 = vpop.permute.xlu0 %111
    %v114 = vadd.f32 %v104, %v112
    %vm115 = vcmask 23552
    %v116 = vsel %vm115, %v87, 0.0
    %117 = vadd.xlane.f32.xlu0 %v116
    %v118 = vpop.xlane.xlu0 %117
    %v119 = vrcp.pop %v118
    %v120 = vmul.f32 %v118, %v119
    %v121 = vsub.f32 1.0, %v120
    %v122 = vmul.f32 %v119, %v121
    %v123 = vadd.f32 %v119, %v122
    %vm124 = vweird.f32 %v118
    %vm125 = vweird.f32 %v119
    %vm126 = vmor %vm124, %vm125
    %v127 = vsel %vm126, %v119, %v123
    %v128 = vand.u32 2147483647, %v118
    %vm129 = vcmp.eq.f32.partialorder %v128, 8.507059e+37
    %v130 = vand.u32 %v118, 2147483648
    %v131 = vor.u32 1.1754944e-38, %v130
    %v132 = vsel %vm129, %v131, %v127
    %v133 = vmul.f32 1.0, %v132
    %v134 = vmul.f32 %v114, %v133
    %v135 = vld [vmem:[#allocation7] sm:$0xff]
    %v136 = vld [vmem:[#allocation7 + $0x8] sm:$0xff]
    %v137 = vld [vmem:[#allocation7 + $0x10] sm:$0xff]
    %v138 = vld [vmem:[#allocation7 + $0x18] sm:$0xff]
    %v139 = vld [vmem:[%s3] sm:$0x1]
    %v141 = vperm.slane %v139, 0
    %vm143 = vcmask 261120
    %v145 = vsel %vm143, %v134, 0
    %147 = vmatpush.msra.mxu0 0.0
    %148 = vmatpush.msra.mxu0 0.0
    %149 = vmatpush.msra.mxu0 0.0
    %150 = vmatpush.msra.mxu0 0.0
    %151 = vmatpush.msra.mxu0 0.0
    %152 = vmatpush.msra.mxu0 0.0
    %153 = vmatpush.msra.mxu0 0.0
    %154 = vmatpush.msra.mxu0 0.0
    %155 = vmatpush.msra.mxu0 0.0
    %156 = vmatpush.msra.mxu0 0.0
    %157 = vmatpush.msra.mxu0 0.0
    %158 = vmatpush.msra.mxu0 0.0
    %159 = vmatpush.msra.mxu0 %v138
    %160 = vmatpush.msra.mxu0 %v137
    %161 = vmatpush.msra.mxu0 %v136
    %162 = vmatpush.msra.mxu0 %v135
    %163 = vmatmul.f32.gmra.mxu0 %v145
    %v164 = vpop.f32.mrf.mxu0
    %v165 = vadd.f32 %v141, %v164
    %166 = vdwg.mxu0
    %v167 = vmax.f32 %v165, 0.0
    %v168 = vld [vmem:[#allocation8] sm:$0xff]
    %v169 = vld [vmem:[#allocation8 + $0x8] sm:$0xff]
    %v170 = vld [vmem:[#allocation8 + $0x10] sm:$0xff]
    %v171 = vld [vmem:[#allocation8 + $0x18] sm:$0xff]
    %v172 = vld [vmem:[#allocation8 + $0x20] sm:$0xff]
    %v173 = vld [vmem:[#allocation8 + $0x28] sm:$0xff]
    %v174 = vld [vmem:[#allocation8 + $0x30] sm:$0xff]
    %v175 = vld [vmem:[#allocation8 + $0x38] sm:$0xff]
    %v176 = vld [vmem:[#allocation8 + $0x40] sm:$0xff]
    %v177 = vld [vmem:[#allocation8 + $0x48] sm:$0xff]
    %v178 = vld [vmem:[#allocation8 + $0x50] sm:$0xff]
    %v179 = vld [vmem:[#allocation8 + $0x58] sm:$0xff]
    %v180 = vld [vmem:[#allocation8 + $0x60] sm:$0xff]
    %v181 = vld [vmem:[#allocation8 + $0x68] sm:$0xff]
    %v182 = vld [vmem:[#allocation8 + $0x70] sm:$0xff]
    %v183 = vld [vmem:[#allocation8 + $0x78] sm:$0xff]
    %v184 = vld [vmem:[%s5] sm:$0x1]
    %v186 = vperm.slane %v184, 0
    %188 = vmatpush.msra.mxu0 %v183
    %189 = vmatpush.msra.mxu0 %v182
    %190 = vmatpush.msra.mxu0 %v181
    %191 = vmatpush.msra.mxu0 %v180
    %192 = vmatpush.msra.mxu0 %v179
    %193 = vmatpush.msra.mxu0 %v178
    %194 = vmatpush.msra.mxu0 %v177
    %195 = vmatpush.msra.mxu0 %v176
    %196 = vmatpush.msra.mxu0 %v175
    %197 = vmatpush.msra.mxu0 %v174
    %198 = vmatpush.msra.mxu0 %v173
    %199 = vmatpush.msra.mxu0 %v172
    %200 = vmatpush.msra.mxu0 %v171
    %201 = vmatpush.msra.mxu0 %v170
    %202 = vmatpush.msra.mxu0 %v169
    %203 = vmatpush.msra.mxu0 %v168
    %204 = vmatmul.f32.gmra.mxu0 %v167
    %v205 = vpop.f32.mrf.mxu0
    %v206 = vadd.f32 %v186, %v205
    %207 = vdwg.mxu0
    %v208 = vlaneseq
    %v209 = vand.u32 %v208, 127
    %vm210 = vcmp.ge.s32.totalorder %v209, 64
    %v211 = vmul.f32 %v206, 1.442695
    %v212 = vpow.pop %v211
    %v213 = vsel %vm210, %v212, %v206
    %214 = vst [vmem:[#allocation10] sm:$0xff] %v213
    // Predicated region
    $region42: #{tpu_custom_call.1} parent=1 // pred_check
      _
    $region43: #{tpu_custom_call.1} parent=1 // pred_check_branch
      %216 = sbr.rel (0) target = $region45
    $region44: #{tpu_custom_call.1} parent=1 // pred_region
      %218 = vsyncadd [#allocation4], 96
      %s219 = sshll.u32 [#allocation10], 4
      %s220 = int_to_ptr.vmem [resolvable:$true] %s219
      %s221 = sshll.u32 %s6, 4
      %s222 = int_to_ptr.hbm [resolvable:$true] %s221
      %227 = dma.vmem_to_hbm [thread:$0]  %s220, 32, %s222, [#allocation4], 32, 32, 2
    $region45: #{tpu_custom_call.1} parent=1 // pred_fallthru
      _
    // Predicated region
    $region46: #{tpu_custom_call.1} parent=1 // pred_check
      _
    $region47: #{tpu_custom_call.1} parent=1 // pred_check_branch
      %229 = sbr.rel (0) target = $region49
    $region48: #{tpu_custom_call.1} parent=1 // pred_region
      %231 = dma.done [#allocation4], 128
    $region49: #{tpu_custom_call.1} parent=1 // pred_fallthru
      _
    %232 = vsyncpa [#allocation3], 1
    %233 = vsyncpa [#allocation6], 1
    %234 = vsyncpa [#allocation9], 1
    %235 = vsyncpa [#allocation4], 1

</llo_original>
